<compile_context>
chip_gen: v6e
topology: v6e:2x2x1
jax: 0.10.0
libtpu: 0.0.40
codegen_flags: <defaults>
</compile_context>

<pallas_src>
import functools

import jax
import jax.numpy as jnp
from jax.experimental import pallas as pl
from jax.experimental.pallas import tpu as pltpu

EPS = 1e-5          # nn.InstanceNorm2d default eps
NEG_SLOPE = 0.01    # nn.LeakyReLU default negative_slope
LANE = 128
SUBLANE = 8


def _round_up(x, m):
    return (x + m - 1) // m * m


@functools.lru_cache(maxsize=1)
def _roll_matches_numpy_convention():
    """One-off probe kernel: does pltpu.roll use jnp.roll's sign convention?"""
    def probe(x_ref, o_ref):
        o_ref[...] = pltpu.roll(x_ref[...], 1, axis=1)   # positive axis only

    x = jnp.broadcast_to(
        jnp.arange(LANE, dtype=jnp.float32)[None, :], (SUBLANE, LANE))
    y = pl.pallas_call(
        probe,
        out_shape=jax.ShapeDtypeStruct((SUBLANE, LANE), jnp.float32),
    )(x)
    return bool(jnp.allclose(y, jnp.roll(x, 1, axis=1)))


def _conv_in_lrelu(x, w_ref, b_ref, mask, shifts, inv_hw):
    """Conv3x3(+bias) + InstanceNorm2d + LeakyReLU for one image, all in VMEM.

    x:      (Cin, L)  f32, zero outside the valid padded interior
    w_ref:  (9, Cout, Cin) tap-major transposed conv weights
    b_ref:  (Cout, 1) bias
    mask:   (1, L) f32, 1.0 on the H*W interior positions, 0 elsewhere
    """
    cout = w_ref.shape[1]
    L = x.shape[-1]

    # In-kernel im2col: 9 static lane rolls (XLU) + 9 accumulated MXU matmuls.
    acc = jnp.zeros((cout, L), jnp.float32)
    for t, s in enumerate(shifts):
        xs = x if s == 0 else pltpu.roll(x, s, axis=1)
        acc = acc + jnp.dot(w_ref[t], xs, preferred_element_type=jnp.float32)
    acc = (acc + b_ref[...]) * mask              # bias, then zero border/tail lanes

    # InstanceNorm2d (no affine, no running stats): one-pass per-channel stats
    # over the H*W interior (border/tail lanes are zero, so plain sums work).
    mean = jnp.sum(acc, axis=-1, keepdims=True) * inv_hw      # (Cout, 1)
    ex2 = jnp.sum(acc * acc, axis=-1, keepdims=True) * inv_hw
    var = ex2 - mean * mean
    y = (acc - mean) * jax.lax.rsqrt(var + EPS)

    y = jnp.where(y >= 0, y, NEG_SLOPE * y)      # LeakyReLU
    return y * mask                              # re-zeroed halo = next conv's zero padding


def _double_conv_kernel(x_ref, w1_ref, b1_ref, w2_ref, b2_ref, mask_ref, o_ref,
                        *, shifts, inv_hw):
    x = x_ref[0]                                 # (Cin, L)
    mask = mask_ref[...]                         # (1, L)
    y1 = _conv_in_lrelu(x, w1_ref, b1_ref, mask, shifts, inv_hw)   # stays in VMEM
    y2 = _conv_in_lrelu(y1, w2_ref, b2_ref, mask, shifts, inv_hw)
    o_ref[0] = y2.astype(o_ref.dtype)


def double_conv2d(x_nchw, params):
    """Matches DoubleConv2D.forward: (conv3x3 -> InstanceNorm2d -> LeakyReLU) x 2."""
    w1, b1, w2, b2 = params
    N, Cin, H, W = x_nchw.shape
    C1, C2 = w1.shape[-1], w2.shape[-1]
    Hp, Wp = H + 2, W + 2
    HWp = Hp * Wp
    L = _round_up(HWp, LANE)                     # lane-aligned flattened spatial axis
    inv_hw = 1.0 / float(H * W)

    # Sublane-align channel counts (zero padding; stripped at the end).
    Cin_p, C1_p, C2_p = (_round_up(c, SUBLANE) for c in (Cin, C1, C2))

    # Static roll amounts for the nine 3x3 taps on the flattened padded grid:
    # shifted[p] must equal x[p + off] with off = (dy-1)*Wp + (dx-1).
    numpy_sign = _roll_matches_numpy_convention()
    shifts = []
    for dy in range(3):
        for dx in range(3):
            off = (dy - 1) * Wp + (dx - 1)
            shifts.append(((-off) % L) if numpy_sign else (off % L))
    shifts = tuple(shifts)

    # Host-side prep: one spatial zero-pad + flatten (no 9x im2col inflation).
    xpad = jnp.pad(x_nchw.astype(jnp.float32),
                   ((0, 0), (0, Cin_p - Cin), (1, 1), (1, 1)))     # (N, Cin_p, Hp, Wp)
    x_flat = jnp.pad(xpad.reshape(N, Cin_p, HWp),
                     ((0, 0), (0, 0), (0, L - HWp)))               # (N, Cin_p, L)

    def prep_w(w, cout_p, cin_p):                # (3,3,Ci,Co) -> (9, Co_p, Ci_p)
        wt = jnp.transpose(w, (0, 1, 3, 2)).reshape(9, w.shape[3], w.shape[2])
        return jnp.pad(wt.astype(jnp.float32),
                       ((0, 0), (0, cout_p - w.shape[3]), (0, cin_p - w.shape[2])))

    w1t = prep_w(w1, C1_p, Cin_p)
    w2t = prep_w(w2, C2_p, C1_p)
    b1c = jnp.pad(b1.astype(jnp.float32), (0, C1_p - C1)).reshape(C1_p, 1)
    b2c = jnp.pad(b2.astype(jnp.float32), (0, C2_p - C2)).reshape(C2_p, 1)

    mask2d = jnp.zeros((Hp, Wp), jnp.float32).at[1:-1, 1:-1].set(1.0)
    mask = jnp.pad(mask2d.reshape(1, HWp), ((0, 0), (0, L - HWp)))  # (1, L)

    kernel = functools.partial(_double_conv_kernel, shifts=shifts, inv_hw=inv_hw)

    out_flat = pl.pallas_call(
        kernel,
        out_shape=jax.ShapeDtypeStruct((N, C2_p, L), x_nchw.dtype),
        grid=(N,),
        in_specs=[
            pl.BlockSpec((1, Cin_p, L), lambda n: (n, 0, 0)),
            pl.BlockSpec((9, C1_p, Cin_p), lambda n: (0, 0, 0)),
            pl.BlockSpec((C1_p, 1), lambda n: (0, 0)),
            pl.BlockSpec((9, C2_p, C1_p), lambda n: (0, 0, 0)),
            pl.BlockSpec((C2_p, 1), lambda n: (0, 0)),
            pl.BlockSpec((1, L), lambda n: (0, 0)),
        ],
        out_specs=pl.BlockSpec((1, C2_p, L), lambda n: (n, 0, 0)),
        compiler_params=pltpu.CompilerParams(
            dimension_semantics=("parallel",),
            vmem_limit_bytes=32 * 1024 * 1024),
    )(x_flat, w1t, b1c, w2t, b2c, mask)

    # Lane-dense output is already channel-major (NCHW); crop halo + channel pad.
    out = out_flat[:, :C2, :HWp].reshape(N, C2, Hp, Wp)[:, :, 1:-1, 1:-1]
    return out


def _reference(x_nchw, params):
    # Pure-JAX reference for correctness checking.
    w1, b1, w2, b2 = params

    def block(x, w, b):
        y = jax.lax.conv_general_dilated(
            x, w, window_strides=(1, 1), padding="SAME",
            dimension_numbers=("NHWC", "HWIO", "NHWC")) + b
        mean = jnp.mean(y, axis=(1, 2), keepdims=True)
        var = jnp.var(y, axis=(1, 2), keepdims=True)
        y = (y - mean) * jax.lax.rsqrt(var + EPS)
        return jnp.where(y >= 0, y, NEG_SLOPE * y)

    x = jnp.transpose(x_nchw, (0, 2, 3, 1))
    y = block(block(x, w1, b1), w2, b2)
    return jnp.transpose(y, (0, 3, 1, 2))


if __name__ == "__main__":
    N, Cin, Cout, H, W = 2, 4, 8, 16, 16

    key = jax.random.PRNGKey(0)
    kx, k1, k2, k3, k4 = jax.random.split(key, 5)
    x = jax.random.normal(kx, (N, Cin, H, W), jnp.float32)       # NCHW, like PyTorch
    w1 = jax.random.normal(k1, (3, 3, Cin, Cout), jnp.float32) * 0.2
    b1 = jax.random.normal(k2, (Cout,), jnp.float32) * 0.1
    w2 = jax.random.normal(k3, (3, 3, Cout, Cout), jnp.float32) * 0.2
    b2 = jax.random.normal(k4, (Cout,), jnp.float32) * 0.1
    params = (w1, b1, w2, b2)

    out = jax.block_until_ready(double_conv2d(x, params))
    ref = jax.block_until_ready(_reference(x, params))

    assert out.shape == (N, Cout, H, W), out.shape
    err = float(jnp.max(jnp.abs(out - ref)))
    if err < 1e-3:
        print("KERNEL_OK")
    else:
        print(f"MISMATCH max abs err = {err}")
</pallas_src>

<mosaic_0001>
module attributes {stable_mosaic.version = 11 : i64} {
  func.func @probe(%arg0: memref<8x128xf32, #tpu.memory_space<vmem>>, %arg1: memref<8x128xf32, #tpu.memory_space<vmem>>) attributes {dimension_semantics = [], scalar_prefetch = 0 : i64, scratch_operands = 0 : i64, tpu.core_type = #tpu.core_type<tc>} {
    %c0 = arith.constant 0 : index
    %c0_0 = arith.constant 0 : index
    %0 = vector.load %arg0[%c0, %c0_0] : memref<8x128xf32, #tpu.memory_space<vmem>>, vector<8x128xf32>
    %c1_i32 = arith.constant 1 : i32
    %1 = tpu.dynamic_rotate %0 by %c1_i32 dim 1 : vector<8x128xf32>, i32 -> vector<8x128xf32>
    %c0_1 = arith.constant 0 : index
    %c0_2 = arith.constant 0 : index
    %2 = vector.load %arg1[%c0_1, %c0_2] : memref<8x128xf32, #tpu.memory_space<vmem>>, vector<8x128xf32>
    tpu.vector_store %arg1[%c0_1, %c0_2], %1 {strides = array<i32>} : memref<8x128xf32, #tpu.memory_space<vmem>>, vector<8x128xf32>,
    return
  }
}

</mosaic_0001>

<llo_original>
// kernel: tpu_custom_call.1
$region0: #{tpu_custom_call.1}
  #allocation0 [shape = 'u32[]', space=smem, size = 0x4, offset = 0x4, fixed_abs, tag = 'smem constant byte address 0x4 - core index']
  #allocation1 [shape = 'u32[144,128]{1,0:T(1,128)}', space=vmem, size = 0x12000, scoped, tag = 'internal scratch']
  %s0 = inlined_call_operand.hbm [shape: f32[8,128], index: 0, kind: input, shape index: {}]
  %s1 = inlined_call_operand.hbm [shape: f32[8,128], index: 1, kind: output, shape index: {}]
  %s2 = sld [smem:[#allocation0]]
  $region18: #{tpu_custom_call.1} parent=0
    _
  %s4 = ssub.s32 1, %s2
  %s5 = scalar_select 0, %s4, %s2
  $region1: #{tpu_custom_call.1} parent=0
    #allocation2 [shape = 'u8[4096]{0}', space=vmem, size = 0x1000, scoped, tag = 'input window, operand 0, single buffered']
    #allocation3 [shape = 's32[1]{0}', space=sflag, size = 0x4, scoped, tag = 'scoped memory for tpu_custom_call.1']
    #allocation4 [shape = 's32[1]{0}', space=sflag, size = 0x4, scoped, tag = 'scoped memory for tpu_custom_call.1']
    #allocation5 [shape = 'u8[4096]{0}', space=vmem, size = 0x1000, scoped, tag = 'output window, operand 0, single buffered']
    %6 = vsyncpa [#allocation3], 0
    %7 = vsyncpa [#allocation4], 0
    // Predicated region
    $region2: #{tpu_custom_call.1} parent=1 // pred_check
      _
    $region3: #{tpu_custom_call.1} parent=1 // pred_check_branch
      %9 = sbr.rel (0) target = $region5
    $region4: #{tpu_custom_call.1} parent=1 // pred_region
      %s11 = ssub.s32 128, 128
      %12 = vsyncadd [#allocation3], %s11
      %s14 = sshll.u32 [#allocation2], 4
      %s15 = int_to_ptr.vmem [resolvable:$true] %s14
      %17 = dma.hbm_to_vmem [thread:$0]  %s0, 128, %s15, [#allocation3]
    $region5: #{tpu_custom_call.1} parent=1 // pred_fallthru
      _
    // Predicated region
    $region6: #{tpu_custom_call.1} parent=1 // pred_check
      _
    $region7: #{tpu_custom_call.1} parent=1 // pred_check_branch
      %19 = sbr.rel (0) target = $region9
    $region8: #{tpu_custom_call.1} parent=1 // pred_region
      %20 = dma.done [#allocation3], 128
    $region9: #{tpu_custom_call.1} parent=1 // pred_fallthru
      _
    %v21 = vld [vmem:[#allocation2] sm:$0xff]
    %22 = vrot.lane.b32.xlu0 %v21, 1
    %v23 = vpop.permute.xlu0 %22
    %24 = vst [vmem:[#allocation5] sm:$0xff] %v23
    // Predicated region
    $region10: #{tpu_custom_call.1} parent=1 // pred_check
      _
    $region11: #{tpu_custom_call.1} parent=1 // pred_check_branch
      %26 = sbr.rel (0) target = $region13
    $region12: #{tpu_custom_call.1} parent=1 // pred_region
      %s28 = ssub.s32 128, 128
      %29 = vsyncadd [#allocation4], %s28
      %s31 = sshll.u32 [#allocation5], 4
      %s32 = int_to_ptr.vmem [resolvable:$true] %s31
      %34 = dma.vmem_to_hbm [thread:$0]  %s32, 128, %s1, [#allocation4]
    $region13: #{tpu_custom_call.1} parent=1 // pred_fallthru
      _
    // Predicated region
    $region14: #{tpu_custom_call.1} parent=1 // pred_check
      _
    $region15: #{tpu_custom_call.1} parent=1 // pred_check_branch
      %36 = sbr.rel (0) target = $region17
    $region16: #{tpu_custom_call.1} parent=1 // pred_region
      %37 = dma.done [#allocation4], 128
    $region17: #{tpu_custom_call.1} parent=1 // pred_fallthru
      _
    %38 = vsyncpa [#allocation3], 1
    %39 = vsyncpa [#allocation4], 1

</llo_original>
